<compile_context>
chip_gen: v7x
topology: tpu7x:2x2x1
jax: 0.10.0
libtpu: 0.0.40
codegen_flags: <defaults>
</compile_context>

<pallas_src>
import functools

import jax
import jax.numpy as jnp
from jax import lax
from jax.experimental import pallas as pl
from jax.experimental.pallas import tpu as pltpu


def _round_up(v, mult):
    return ((v + mult - 1) // mult) * mult


def _kernel_regression_kernel(x_ref, xsq_ref, xt_ref, xtsq_ref, y_ref,
                              o_ref, acc_ref, *,
                              scale, hide_future, leave_one_out, tm, tn):
    i = pl.program_id(0)          # m-tile index (parallel axis)
    j = pl.program_id(1)          # n-tile index (reduction axis, innermost)

    @pl.when(j == 0)
    def _init():
        acc_ref[...] = jnp.zeros_like(acc_ref)

    def _compute():
        x = x_ref[...]            # (tm, d_pad) - keep input dtype, feed MXU directly
        xt = xt_ref[...]          # (tn, d_pad)
        # Contract the feature dim of BOTH operands (MXU handles transposed RHS).
        cross = lax.dot_general(x, xt, (((1,), (1,)), ((), ())),
                                preferred_element_type=jnp.float32)   # (tm, tn)
        sq = xsq_ref[...] + xtsq_ref[...] - 2.0 * cross               # (tm, tn)
        sq = jnp.maximum(sq, 0.0)                                     # clamp fp error
        # Single VPU multiply (scale = -0.5 / bw^2) feeding the EUP exp.
        w = jnp.exp(sq * scale)

        if hide_future or leave_one_out:
            # GLOBAL indices: tile offset + local iota.
            row = lax.broadcasted_iota(jnp.int32, (tm, tn), 0) + i * tm
            col = lax.broadcasted_iota(jnp.int32, (tm, tn), 1) + j * tn
            if hide_future and leave_one_out:
                keep = col < row                  # upper triangle AND diagonal -> 0
            elif hide_future:
                keep = col <= row                 # strict upper triangle -> 0
            else:
                keep = col != row                 # diagonal -> 0
            w = jnp.where(keep, w, 0.0)

        # (tm, tn) @ (tn, 1) replaced by VPU multiply + XLU lane reduction:
        # frees the MXU and avoids a 1/128-lane-utilization matmul.
        contrib = jnp.sum(w * y_ref[...], axis=-1, keepdims=True)     # (tm, 1)
        acc_ref[...] += contrib

    if hide_future:
        # n-tiles fully in the strict upper triangle contribute nothing: skip
        # their matmul / exp / reduce entirely (init + finalize still run).
        pl.when(j * tn <= i * tm + (tm - 1))(_compute)
    else:
        _compute()

    @pl.when(j == pl.num_programs(1) - 1)
    def _finalize():
        o_ref[...] = acc_ref[...].astype(o_ref.dtype)


def kernel_regression(x, X_train, y_train, *, hide_future=False,
                      leave_one_out=False, bandwidth=1.0,
                      block_m=128, block_n=512):
    """Pallas equivalent of KernelRegressionLayer(X_train, y_train)(x, p=2, ...)."""
    # TODO(synk): only the p=2 (squared-L2) path and the default Gaussian kernel
    # are implemented; arbitrary p-norms / user-supplied kernels are not translated.
    m, d = x.shape
    n, d2 = X_train.shape
    assert d == d2
    assert y_train.shape == (n, 1)

    tm = min(block_m, _round_up(m, 8))       # sublane-aligned m tile
    tn = min(block_n, _round_up(n, 128))     # lane-aligned n tile
    m_pad = _round_up(m, tm)
    n_pad = _round_up(n, tn)
    d_pad = _round_up(d, 128)

    # Zero padding is exact: padded feature dims add 0 to every distance, and
    # padded training rows have y == 0 so they add 0 to every prediction.
    xp = jnp.pad(x, ((0, m_pad - m), (0, d_pad - d)))
    xtp = jnp.pad(X_train, ((0, n_pad - n), (0, d_pad - d)))
    y_row = jnp.pad(y_train.astype(jnp.float32),
                    ((0, n_pad - n), (0, 0))).reshape(1, n_pad)

    # Hoisted squared norms (f32) so the kernel never re-reduces x / X_train.
    x_sq = jnp.sum(xp.astype(jnp.float32) ** 2, axis=-1, keepdims=True)       # (m_pad, 1)
    xt_sq = jnp.sum(xtp.astype(jnp.float32) ** 2, axis=-1).reshape(1, n_pad)  # (1, n_pad)

    scale = -0.5 / (float(bandwidth) * float(bandwidth))
    kern = functools.partial(
        _kernel_regression_kernel,
        scale=scale,
        hide_future=bool(hide_future),
        leave_one_out=bool(leave_one_out),
        tm=tm, tn=tn)

    grid = (m_pad // tm, n_pad // tn)
    out = pl.pallas_call(
        kern,
        out_shape=jax.ShapeDtypeStruct((m_pad, 1), jnp.float32),
        grid_spec=pltpu.PrefetchScalarGridSpec(
            num_scalar_prefetch=0,
            grid=grid,
            in_specs=[
                pl.BlockSpec((tm, d_pad), lambda i, j: (i, 0)),   # x tile
                pl.BlockSpec((tm, 1), lambda i, j: (i, 0)),       # ||x||^2
                pl.BlockSpec((tn, d_pad), lambda i, j: (j, 0)),   # X_train tile
                pl.BlockSpec((1, tn), lambda i, j: (0, j)),       # ||X_train||^2
                pl.BlockSpec((1, tn), lambda i, j: (0, j)),       # y_train row
            ],
            out_specs=pl.BlockSpec((tm, 1), lambda i, j: (i, 0)),
            scratch_shapes=[pltpu.VMEM((tm, 1), jnp.float32)],
        ),
        compiler_params=pltpu.CompilerParams(
            dimension_semantics=("parallel", "arbitrary"),
            vmem_limit_bytes=32 * 1024 * 1024,
        ),
    )(xp, x_sq, xtp, xt_sq, y_row)

    return out[:m]


def _reference(x, X_train, y_train, *, hide_future=False, leave_one_out=False,
               bandwidth=1.0):
    sq = jnp.sum((x[:, None, :] - X_train[None, :, :]) ** 2, axis=-1)
    row = jnp.arange(sq.shape[0])[:, None]
    col = jnp.arange(sq.shape[1])[None, :]
    if hide_future:
        sq = jnp.where(col > row, jnp.inf, sq)
    if leave_one_out:
        sq = jnp.where(col == row, jnp.inf, sq)
    w = jnp.exp(-sq / (2.0 * bandwidth ** 2))
    return w @ y_train


if __name__ == "__main__":
    key = jax.random.PRNGKey(0)
    k1, k2, k3, k4, k5 = jax.random.split(key, 5)

    # Small case (single tile each way).
    m, n, d = 8, 16, 32
    x = jax.random.normal(k1, (m, d), dtype=jnp.float32)
    X_train = jax.random.normal(k2, (n, d), dtype=jnp.float32)
    y_train = jax.random.normal(k3, (n, 1), dtype=jnp.float32)

    out = jax.block_until_ready(kernel_regression(x, X_train, y_train))
    ref = _reference(x, X_train, y_train)
    assert out.shape == (m, 1)
    assert jnp.allclose(out, ref, atol=1e-4, rtol=1e-4)

    # Masked paths (x == X_train), still single tile; exercises hide_future
    # alone, leave_one_out alone, and the combined single-compare path.
    for hf, loo in ((True, False), (False, True), (True, True)):
        out_mask = jax.block_until_ready(
            kernel_regression(X_train, X_train, y_train,
                              hide_future=hf, leave_one_out=loo))
        ref_mask = _reference(X_train, X_train, y_train,
                              hide_future=hf, leave_one_out=loo)
        assert jnp.allclose(out_mask, ref_mask, atol=1e-4, rtol=1e-4)

    # Multi-tile case exercising the grid, the scratch accumulator and the
    # hide_future tile-skip path (3x3 grid of (128, 128) tiles).
    M = N = 384
    D = 64
    xb = jax.random.normal(k4, (N, D), dtype=jnp.float32)
    yb = jax.random.normal(k5, (N, 1), dtype=jnp.float32)
    out_big = jax.block_until_ready(
        kernel_regression(xb, xb, yb, hide_future=True, leave_one_out=True,
                          block_m=128, block_n=128))
    ref_big = _reference(xb, xb, yb, hide_future=True, leave_one_out=True)
    assert out_big.shape == (N, 1)
    assert jnp.allclose(out_big, ref_big, atol=1e-3, rtol=1e-3)

    print("KERNEL_OK")
</pallas_src>

<mosaic_0001>
module attributes {stable_mosaic.version = 11 : i64} {
  func.func @_kernel_regression_kernel(%arg0: i32, %arg1: i32, %arg2: memref<8x128xf32, #tpu.memory_space<vmem>>, %arg3: memref<8x1xf32, #tpu.memory_space<vmem>>, %arg4: memref<128x128xf32, #tpu.memory_space<vmem>>, %arg5: memref<1x128xf32, #tpu.memory_space<vmem>>, %arg6: memref<1x128xf32, #tpu.memory_space<vmem>>, %arg7: memref<8x1xf32, #tpu.memory_space<vmem>>, %arg8: memref<8x1xf32, #tpu.memory_space<vmem>>) attributes {dimension_semantics = [#tpu.dimension_semantics<parallel>, #tpu.dimension_semantics<arbitrary>], iteration_bounds = array<i64: 1, 1>, scalar_prefetch = 0 : i64, scratch_operands = 1 : i64, tpu.core_type = #tpu.core_type<tc>, window_params = [{transform_indices = @transform_0, window_bounds = array<i64: 8, 128>}, {transform_indices = @transform_1, window_bounds = array<i64: 8, 1>}, {transform_indices = @transform_2, window_bounds = array<i64: 128, 128>}, {transform_indices = @transform_3, window_bounds = array<i64: 1, 128>}, {transform_indices = @transform_4, window_bounds = array<i64: 1, 128>}, {transform_indices = @transform_5, window_bounds = array<i64: 8, 1>}]} {
    %c0_i32 = arith.constant 0 : i32
    %0 = arith.cmpi eq, %arg1, %c0_i32 : i32
    %1 = arith.extui %0 : i1 to i32
    %c0_i32_0 = arith.constant 0 : i32
    %2 = arith.cmpi ne, %1, %c0_i32_0 : i32
    scf.if %2 {
      %cst_20 = arith.constant 0.000000e+00 : f32
      %30 = vector.broadcast %cst_20 : f32 to vector<8x1xf32>
      %c0_21 = arith.constant 0 : index
      %c0_22 = arith.constant 0 : index
      %31 = vector.load %arg8[%c0_21, %c0_22] : memref<8x1xf32, #tpu.memory_space<vmem>>, vector<8x1xf32>
      tpu.vector_store %arg8[%c0_21, %c0_22], %30 {strides = array<i32>} : memref<8x1xf32, #tpu.memory_space<vmem>>, vector<8x1xf32>,
    } else {
    }
    %c0 = arith.constant 0 : index
    %c0_1 = arith.constant 0 : index
    %3 = vector.load %arg2[%c0, %c0_1] : memref<8x128xf32, #tpu.memory_space<vmem>>, vector<8x128xf32>
    %c0_2 = arith.constant 0 : index
    %c0_3 = arith.constant 0 : index
    %4 = vector.load %arg4[%c0_2, %c0_3] : memref<128x128xf32, #tpu.memory_space<vmem>>, vector<128x128xf32>
    %cst = arith.constant dense<0.000000e+00> : vector<8x128xf32>
    %5 = tpu.matmul %3, %4, %cst {dimension_numbers = #tpu.dot_dimension_numbers<[1], [1], [0], [0], [0, 0, 1, 0], [], []>} : vector<8x128xf32>, vector<128x128xf32>, vector<8x128xf32> -> vector<8x128xf32>
    %c0_4 = arith.constant 0 : index
    %c0_5 = arith.constant 0 : index
    %6 = vector.load %arg3[%c0_4, %c0_5] : memref<8x1xf32, #tpu.memory_space<vmem>>, vector<8x1xf32>
    %c0_6 = arith.constant 0 : index
    %c0_7 = arith.constant 0 : index
    %7 = vector.load %arg5[%c0_6, %c0_7] : memref<1x128xf32, #tpu.memory_space<vmem>>, vector<1x128xf32>
    %8 = vector.broadcast %6 : vector<8x1xf32> to vector<8x128xf32>
    %9 = vector.broadcast %7 : vector<1x128xf32> to vector<8x128xf32>
    %10 = arith.addf %8, %9 : vector<8x128xf32>
    %cst_8 = arith.constant 2.000000e+00 : f32
    %11 = vector.broadcast %cst_8 : f32 to vector<8x128xf32>
    %12 = arith.mulf %11, %5 : vector<8x128xf32>
    %13 = arith.subf %10, %12 : vector<8x128xf32>
    %cst_9 = arith.constant 0.000000e+00 : f32
    %14 = vector.broadcast %cst_9 : f32 to vector<8x128xf32>
    %15 = arith.maximumf %13, %14 : vector<8x128xf32>
    %cst_10 = arith.constant -5.000000e-01 : f32
    %16 = vector.broadcast %cst_10 : f32 to vector<8x128xf32>
    %17 = arith.mulf %15, %16 : vector<8x128xf32>
    %18 = math.exp %17 : vector<8x128xf32>
    %c0_11 = arith.constant 0 : index
    %c0_12 = arith.constant 0 : index
    %19 = vector.load %arg6[%c0_11, %c0_12] : memref<1x128xf32, #tpu.memory_space<vmem>>, vector<1x128xf32>
    %20 = vector.broadcast %19 : vector<1x128xf32> to vector<8x128xf32>
    %21 = arith.mulf %18, %20 : vector<8x128xf32>
    %cst_13 = arith.constant dense<0.000000e+00> : vector<8xf32>
    %22 = vector.multi_reduction <add>, %21, %cst_13 [1] : vector<8x128xf32> to vector<8xf32>
    %23 = vector.shape_cast %22 : vector<8xf32> to vector<8x1xf32>
    %c0_14 = arith.constant 0 : index
    %c0_15 = arith.constant 0 : index
    %24 = vector.load %arg8[%c0_14, %c0_15] : memref<8x1xf32, #tpu.memory_space<vmem>>, vector<8x1xf32>
    %25 = arith.addf %24, %23 : vector<8x1xf32>
    %c0_16 = arith.constant 0 : index
    %c0_17 = arith.constant 0 : index
    %26 = vector.load %arg8[%c0_16, %c0_17] : memref<8x1xf32, #tpu.memory_space<vmem>>, vector<8x1xf32>
    tpu.vector_store %arg8[%c0_16, %c0_17], %25 {strides = array<i32>} : memref<8x1xf32, #tpu.memory_space<vmem>>, vector<8x1xf32>,
    %c0_i32_18 = arith.constant 0 : i32
    %27 = arith.cmpi eq, %arg1, %c0_i32_18 : i32
    %28 = arith.extui %27 : i1 to i32
    %c0_i32_19 = arith.constant 0 : i32
    %29 = arith.cmpi ne, %28, %c0_i32_19 : i32
    scf.if %29 {
      %c0_20 = arith.constant 0 : index
      %c0_21 = arith.constant 0 : index
      %30 = vector.load %arg8[%c0_20, %c0_21] : memref<8x1xf32, #tpu.memory_space<vmem>>, vector<8x1xf32>
      %c0_22 = arith.constant 0 : index
      %c0_23 = arith.constant 0 : index
      %31 = vector.load %arg7[%c0_22, %c0_23] : memref<8x1xf32, #tpu.memory_space<vmem>>, vector<8x1xf32>
      tpu.vector_store %arg7[%c0_22, %c0_23], %30 {strides = array<i32>} : memref<8x1xf32, #tpu.memory_space<vmem>>, vector<8x1xf32>,
    } else {
    }
    return
  }
  func.func @transform_0(%arg0: i32, %arg1: i32) -> (i32, i32) {
    %c0_i32 = arith.constant 0 : i32
    %c0_i32_0 = arith.constant 0 : i32
    return %arg0, %c0_i32 : i32, i32
  }
  func.func @transform_1(%arg0: i32, %arg1: i32) -> (i32, i32) {
    %c0_i32 = arith.constant 0 : i32
    %c0_i32_0 = arith.constant 0 : i32
    return %arg0, %c0_i32 : i32, i32
  }
  func.func @transform_2(%arg0: i32, %arg1: i32) -> (i32, i32) {
    %c0_i32 = arith.constant 0 : i32
    %c0_i32_0 = arith.constant 0 : i32
    return %arg1, %c0_i32 : i32, i32
  }
  func.func @transform_3(%arg0: i32, %arg1: i32) -> (i32, i32) {
    %c0_i32 = arith.constant 0 : i32
    %c0_i32_0 = arith.constant 0 : i32
    return %c0_i32, %arg1 : i32, i32
  }
  func.func @transform_4(%arg0: i32, %arg1: i32) -> (i32, i32) {
    %c0_i32 = arith.constant 0 : i32
    %c0_i32_0 = arith.constant 0 : i32
    return %c0_i32, %arg1 : i32, i32
  }
  func.func @transform_5(%arg0: i32, %arg1: i32) -> (i32, i32) {
    %c0_i32 = arith.constant 0 : i32
    %c0_i32_0 = arith.constant 0 : i32
    return %arg0, %c0_i32 : i32, i32
  }
}

</mosaic_0001>

<llo_original>
// kernel: tpu_custom_call.1
$region0: #{tpu_custom_call.1}
  #allocation0 [shape = 'u32[]', space=smem, size = 0x4, offset = 0x4, fixed_abs, tag = 'smem constant byte address 0x4 - core index']
  #allocation1 [shape = 'u32[144,128]{1,0:T(1,128)}', space=vmem, size = 0x12000, scoped, tag = 'internal scratch']
  #allocation2 [shape = 'f32[8,1]{1,0:T(8,128)}', space=vmem, size = 0x1000, scoped, tag = 'scratch operand']
  %s0 = inlined_call_operand.vmem [shape: f32[8,128], index: 0, kind: input, shape index: {}]
  %s1 = inlined_call_operand.vmem [shape: f32[8,1], index: 1, kind: input, shape index: {}]
  %s2 = inlined_call_operand.hbm [shape: f32[128,128], index: 2, kind: input, shape index: {}]
  %s3 = inlined_call_operand.vmem [shape: f32[1,128], index: 3, kind: input, shape index: {}]
  %s4 = inlined_call_operand.vmem [shape: f32[1,128], index: 4, kind: input, shape index: {}]
  %s5 = inlined_call_operand.vmem [shape: f32[8,1], index: 5, kind: output, shape index: {}]
  %s6 = sld [smem:[#allocation0]]
  $region42: #{tpu_custom_call.1} parent=0
    _
  %s8 = ssub.s32 1, %s6
  %s9 = scalar_select 0, %s8, %s6
  $region1: #{tpu_custom_call.1} parent=0
    #allocation3 [shape = 'u8[65536]{0}', space=vmem, size = 0x10000, scoped, tag = 'input window, operand 2, single buffered']
    #allocation4 [shape = 's32[1]{0}', space=sflag, size = 0x4, scoped, tag = 'scoped memory for tpu_custom_call.1']
    %10 = vsyncpa [#allocation4], 0
    // Predicated region
    $region2: #{tpu_custom_call.1} parent=1 // pred_check
      _
    $region3: #{tpu_custom_call.1} parent=1 // pred_check_branch
      %12 = sbr.rel (0) target = $region5
    $region4: #{tpu_custom_call.1} parent=1 // pred_region
      _
    $region5: #{tpu_custom_call.1} parent=1 // pred_fallthru
      _
    // Predicated region
    $region6: #{tpu_custom_call.1} parent=1 // pred_check
      _
    $region7: #{tpu_custom_call.1} parent=1 // pred_check_branch
      %14 = sbr.rel (0) target = $region9
    $region8: #{tpu_custom_call.1} parent=1 // pred_region
      _
    $region9: #{tpu_custom_call.1} parent=1 // pred_fallthru
      _
    // Predicated region
    $region10: #{tpu_custom_call.1} parent=1 // pred_check
      _
    $region11: #{tpu_custom_call.1} parent=1 // pred_check_branch
      %16 = sbr.rel (0) target = $region13
    $region12: #{tpu_custom_call.1} parent=1 // pred_region
      %s18 = ssub.s32 2048, 2048
      %19 = vsyncadd [#allocation4], %s18
      %s20 = sshll.u32 [#allocation3], 4
      %s21 = int_to_ptr.vmem [resolvable:$true] %s20
      %26 = dma.hbm_to_vmem [thread:$0]  %s2, 2048, %s21, [#allocation4], 128, 128, 8
    $region13: #{tpu_custom_call.1} parent=1 // pred_fallthru
      _
    // Predicated region
    $region14: #{tpu_custom_call.1} parent=1 // pred_check
      _
    $region15: #{tpu_custom_call.1} parent=1 // pred_check_branch
      %28 = sbr.rel (0) target = $region17
    $region16: #{tpu_custom_call.1} parent=1 // pred_region
      _
    $region17: #{tpu_custom_call.1} parent=1 // pred_fallthru
      _
    // Predicated region
    $region18: #{tpu_custom_call.1} parent=1 // pred_check
      _
    $region19: #{tpu_custom_call.1} parent=1 // pred_check_branch
      %30 = sbr.rel (0) target = $region21
    $region20: #{tpu_custom_call.1} parent=1 // pred_region
      _
    $region21: #{tpu_custom_call.1} parent=1 // pred_fallthru
      _
    // Predicated region
    $region22: #{tpu_custom_call.1} parent=1 // pred_check
      _
    $region23: #{tpu_custom_call.1} parent=1 // pred_check_branch
      %32 = sbr.rel (0) target = $region25
    $region24: #{tpu_custom_call.1} parent=1 // pred_region
      %33 = dma.done [#allocation4], 2048
    $region25: #{tpu_custom_call.1} parent=1 // pred_fallthru
      _
    %p34 = scmp.eq.s32.totalorder 0, 0
    // Predicated region
    $region26: #{tpu_custom_call.1} parent=1 // pred_check
      %p35 = pneg %p34
    $region27: #{tpu_custom_call.1} parent=1 // pred_check_branch
      %37 = sbr.rel (%p35) target = $region29
    $region28: #{tpu_custom_call.1} parent=1 // pred_region
      %vm38 = vcmask 7168
      %39 = vst.msk [vmem:[#allocation2] sm:$0xff] %vm38, 0.0
    $region29: #{tpu_custom_call.1} parent=1 // pred_fallthru
      _
    %v40 = vld [vmem:[%s0] sm:$0xff]
    %v41 = vld [vmem:[#allocation3] sm:$0xff]
    %v42 = vld [vmem:[#allocation3 + $0x8] sm:$0xff]
    %v43 = vld [vmem:[#allocation3 + $0x10] sm:$0xff]
    %v44 = vld [vmem:[#allocation3 + $0x18] sm:$0xff]
    %v45 = vld [vmem:[#allocation3 + $0x20] sm:$0xff]
    %v46 = vld [vmem:[#allocation3 + $0x28] sm:$0xff]
    %v47 = vld [vmem:[#allocation3 + $0x30] sm:$0xff]
    %v48 = vld [vmem:[#allocation3 + $0x38] sm:$0xff]
    %v49 = vld [vmem:[#allocation3 + $0x40] sm:$0xff]
    %v50 = vld [vmem:[#allocation3 + $0x48] sm:$0xff]
    %v51 = vld [vmem:[#allocation3 + $0x50] sm:$0xff]
    %v52 = vld [vmem:[#allocation3 + $0x58] sm:$0xff]
    %v53 = vld [vmem:[#allocation3 + $0x60] sm:$0xff]
    %v54 = vld [vmem:[#allocation3 + $0x68] sm:$0xff]
    %v55 = vld [vmem:[#allocation3 + $0x70] sm:$0xff]
    %v56 = vld [vmem:[#allocation3 + $0x78] sm:$0xff]
    %57 = vmatprep.subr.mxu0 0.0
    %58 = vmatpush1.xpose.msra.mxu0 %v41
    %59 = vmatprep.subr.mxu0 0.0
    %60 = vmatpush1.xpose.msra.mxu0 %v42
    %61 = vmatprep.subr.mxu0 0.0
    %62 = vmatpush1.xpose.msra.mxu0 %v43
    %63 = vmatprep.subr.mxu0 0.0
    %64 = vmatpush1.xpose.msra.mxu0 %v44
    %65 = vmatprep.subr.mxu0 0.0
    %66 = vmatpush1.xpose.msra.mxu0 %v45
    %67 = vmatprep.subr.mxu0 0.0
    %68 = vmatpush1.xpose.msra.mxu0 %v46
    %69 = vmatprep.subr.mxu0 0.0
    %70 = vmatpush1.xpose.msra.mxu0 %v47
    %71 = vmatprep.subr.mxu0 0.0
    %72 = vmatpush1.xpose.msra.mxu0 %v48
    %73 = vmatprep.subr.mxu0 0.0
    %74 = vmatpush1.xpose.msra.mxu0 %v49
    %75 = vmatprep.subr.mxu0 0.0
    %76 = vmatpush1.xpose.msra.mxu0 %v50
    %77 = vmatprep.subr.mxu0 0.0
    %78 = vmatpush1.xpose.msra.mxu0 %v51
    %79 = vmatprep.subr.mxu0 0.0
    %80 = vmatpush1.xpose.msra.mxu0 %v52
    %81 = vmatprep.subr.mxu0 0.0
    %82 = vmatpush1.xpose.msra.mxu0 %v53
    %83 = vmatprep.subr.mxu0 0.0
    %84 = vmatpush1.xpose.msra.mxu0 %v54
    %85 = vmatprep.subr.mxu0 0.0
    %86 = vmatpush1.xpose.msra.mxu0 %v55
    %87 = vmatprep.subr.mxu0 0.0
    %88 = vmatpush1.xpose.msra.mxu0 %v56
    %89 = vmatprep.subr.mxu0 0.0
    %90 = vmatpush1.xpose.msra.mxu0 0.0
    %91 = vmatprep.subr.mxu0 0.0
    %92 = vmatpush1.xpose.msra.mxu0 0.0
    %93 = vmatprep.subr.mxu0 0.0
    %94 = vmatpush1.xpose.msra.mxu0 0.0
    %95 = vmatprep.subr.mxu0 0.0
    %96 = vmatpush1.xpose.msra.mxu0 0.0
    %97 = vmatprep.subr.mxu0 0.0
    %98 = vmatpush1.xpose.msra.mxu0 0.0
    %99 = vmatprep.subr.mxu0 0.0
    %100 = vmatpush1.xpose.msra.mxu0 0.0
    %101 = vmatprep.subr.mxu0 0.0
    %102 = vmatpush1.xpose.msra.mxu0 0.0
    %103 = vmatprep.subr.mxu0 0.0
    %104 = vmatpush1.xpose.msra.mxu0 0.0
    %105 = vmatprep.subr.mxu0 0.0
    %106 = vmatpush1.xpose.msra.mxu0 0.0
    %107 = vmatprep.subr.mxu0 0.0
    %108 = vmatpush1.xpose.msra.mxu0 0.0
    %109 = vmatprep.subr.mxu0 0.0
    %110 = vmatpush1.xpose.msra.mxu0 0.0
    %111 = vmatprep.subr.mxu0 0.0
    %112 = vmatpush1.xpose.msra.mxu0 0.0
    %113 = vmatprep.subr.mxu0 0.0
    %114 = vmatpush1.xpose.msra.mxu0 0.0
    %115 = vmatprep.subr.mxu0 0.0
    %116 = vmatpush1.xpose.msra.mxu0 0.0
    %117 = vmatprep.subr.mxu0 0.0
    %118 = vmatpush1.xpose.msra.mxu0 0.0
    %119 = vmatprep.subr.mxu0 0.0
    %120 = vmatpush1.xpose.msra.mxu0 0.0
    %121 = vmatprep.mubr.f32.mxu0 0.0
    %122 = vmatmul.mubr.f32.gmra.mrb[0].mxu0 %v40
    %v123 = vpop.f32.mrb[0].mxu0
    %v124 = vadd.f32 0.0, %v123
    %v125 = vpop.f32.mrb[0].mxu0
    %126 = vdwg.mxu0
    %v127 = vld [vmem:[%s1] sm:$0xff]
    %v128 = vld [vmem:[%s3] sm:$0x1]
    %130 = vset.pattern.permute.xlu0 0
    %131 = vperm.xlu0 %130, %v127
    %v132 = vpop.permute.xlu0 %131
    %v135 = vlaneseq
    %v136 = vshrl.u32 %v135, 7
    %v137 = vsub.s32 0, %v136
    %v138 = vrot.slane %v128, %v137
    %v140 = vadd.f32 %v132, %v138
    %v141 = vmul.f32 %v124, 2.0
    %v142 = vsub.f32 %v140, %v141
    %v143 = vmax.f32 %v142, 0.0
    %v144 = vmul.f32 %v143, -0.5
    %v145 = vmul.f32 %v144, 1.442695
    %v146 = vpow.pop %v145
    %v147 = vld [vmem:[%s4] sm:$0x1]
    %v149 = vlaneseq
    %v150 = vshrl.u32 %v149, 7
    %v151 = vsub.s32 0, %v150
    %v152 = vrot.slane %v147, %v151
    %v154 = vmul.f32 %v146, %v152
    %155 = vadd.xlane.f32.xlu0 %v154
    %v156 = vpop.xlane.xlu0 %155
    %v157 = vld [vmem:[#allocation2] sm:$0xff]
    %v158 = vadd.f32 %v157, %v156
    %vm159 = vcmask 7168
    %160 = vst.msk [vmem:[#allocation2] sm:$0xff] %vm159, %v158
    // Predicated region
    $region30: #{tpu_custom_call.1} parent=1 // pred_check
      %p161 = pneg %p34
    $region31: #{tpu_custom_call.1} parent=1 // pred_check_branch
      %163 = sbr.rel (%p161) target = $region33
    $region32: #{tpu_custom_call.1} parent=1 // pred_region
      %v164 = vld [vmem:[#allocation2] sm:$0xff]
      %165 = vst.msk [vmem:[%s5] sm:$0xff] %vm159, %v164
    $region33: #{tpu_custom_call.1} parent=1 // pred_fallthru
      _
    // Predicated region
    $region34: #{tpu_custom_call.1} parent=1 // pred_check
      _
    $region35: #{tpu_custom_call.1} parent=1 // pred_check_branch
      %167 = sbr.rel (0) target = $region37
    $region36: #{tpu_custom_call.1} parent=1 // pred_region
      _
    $region37: #{tpu_custom_call.1} parent=1 // pred_fallthru
      _
    // Predicated region
    $region38: #{tpu_custom_call.1} parent=1 // pred_check
      _
    $region39: #{tpu_custom_call.1} parent=1 // pred_check_branch
      %169 = sbr.rel (0) target = $region41
    $region40: #{tpu_custom_call.1} parent=1 // pred_region
      _
    $region41: #{tpu_custom_call.1} parent=1 // pred_fallthru
      _
    %170 = vsyncpa [#allocation4], 1

</llo_original>
